<compile_context>
chip_gen: v6e
topology: v6e:2x2x1
jax: 0.10.0
libtpu: 0.0.40
codegen_flags: <defaults>
</compile_context>

<pallas_src>
import jax
import jax.numpy as jnp
from jax import lax
from jax.experimental import pallas as pl
from jax.experimental.pallas import tpu as pltpu


def _round_up(n: int, m: int) -> int:
    return ((n + m - 1) // m) * m


_VMEM_BUDGET = 24 << 20  # conservative vs. v7x's 32 MiB default scoped / 64 MiB physical


def _vmem_bytes(tm: int, n_pad: int, d_input: int, c_itemsize: int) -> int:
    # Every BlockSpec operand is double-buffered by default (hence the 2x),
    # including the grid-invariant W / bias blocks.
    return 2 * (tm * d_input * c_itemsize        # x tile
                + n_pad * d_input * c_itemsize   # W (resident)
                + n_pad * 4                      # bias
                + n_pad * tm * 4)                # y^T tile (f32)


def _consequence_kernel(x_ref, w_ref, b_ref, ot_ref):
    # x_ref:  (tm, d_input)       compute dtype (f32 or bf16)
    # w_ref:  (n_pad, d_input)    compute dtype, PyTorch layout, VMEM-resident
    # b_ref:  (n_pad, 1)          f32
    # ot_ref: (n_pad, tm)         f32 -- y^T block: rules on sublanes, batch on lanes
    #
    # Contract d_input (the last/lane dim) of both operands on the MXU:
    # W @ x^T == (x @ W^T)^T, f32 accumulate, then one f32 bias add (lane
    # broadcast) on the VPU.  No transposes anywhere in the kernel.
    acc_t = lax.dot_general(
        w_ref[...], x_ref[...],
        dimension_numbers=(((1,), (1,)), ((), ())),
        preferred_element_type=jnp.float32,
    )
    ot_ref[...] = (acc_t + b_ref[...]).astype(ot_ref.dtype)


def prepare_consequence_params(weight, bias=None, compute_dtype=jnp.float32):
    """One-time parameter prep (at load time, NOT per forward call).

    weight: (n_rules, d_input), bias: (n_rules,) or None.
    Returns (w_prep, b_prep): weight with n_rules padded up to a multiple of 8
    (sublane alignment of the transposed output -- essentially free) and bias
    as an (n_rules_pad, 1) f32 column.
    """
    n_rules, d_input = weight.shape
    n_pad = _round_up(max(n_rules, 1), 8)

    w_prep = jnp.zeros((n_pad, d_input), compute_dtype)
    w_prep = w_prep.at[:n_rules, :].set(weight.astype(compute_dtype))

    b_prep = jnp.zeros((n_pad, 1), jnp.float32)
    if bias is not None:
        b_prep = b_prep.at[:n_rules, 0].set(bias.astype(jnp.float32))

    return w_prep, b_prep


def consequence_layer_forward_t(x, w_prep, b_prep, *, block_m=1024):
    """Hot-path forward. Returns y^T of shape (n_rules_pad, batch), f32.

    Rows >= n_rules are zero padding; fused consumers should consume this slab
    directly and avoid any re-layout.
    """
    batch, d_input = x.shape
    n_pad, dk = w_prep.shape
    assert dk == d_input, (dk, d_input)

    compute_dtype = w_prep.dtype
    c_itemsize = jnp.dtype(compute_dtype).itemsize
    x_c = x.astype(compute_dtype)

    # Batch tile (this is the lane dim of the y^T store):
    #  - small batch: one full-extent block (block == array dims, trivially
    #    satisfies the (8,128) divisibility rule);
    #  - otherwise: a multiple of 128 (lane-dense stores), sized so moderate
    #    batches still produce >= 2 grid steps for v7x's two TensorCores,
    #    capped by block_m and the VMEM budget.  (128-multiples also keep bf16
    #    16-row sublane packing dense.)
    if batch <= 128:
        tm = batch
    else:
        tm = min(block_m, _round_up(pl.cdiv(batch, 2), 128))
        tm = max(128, (tm // 128) * 128)
        while tm > 128 and _vmem_bytes(tm, n_pad, d_input, c_itemsize) > _VMEM_BUDGET:
            tm = max(128, ((tm // 2) // 128) * 128)

    grid = (pl.cdiv(batch, tm),)

    cost = pl.CostEstimate(
        flops=2 * batch * d_input * n_pad,
        transcendentals=0,
        bytes_accessed=(batch * d_input * c_itemsize      # x
                        + n_pad * d_input * c_itemsize    # W (read once, resident)
                        + n_pad * 4                       # bias
                        + n_pad * batch * 4),             # y^T
    )

    cp = dict(dimension_semantics=("parallel",))   # megacore / v7x dual-TC sharding
    est = _vmem_bytes(tm, n_pad, d_input, c_itemsize)
    if est > (16 << 20):
        # Very large rule counts: raise the scoped-VMEM limit (stay < v7x 64 MiB).
        cp["vmem_limit_bytes"] = int(min(est + (4 << 20), 60 << 20))

    return pl.pallas_call(
        _consequence_kernel,
        out_shape=jax.ShapeDtypeStruct((n_pad, batch), jnp.float32),
        grid=grid,
        in_specs=[
            # x tile walks the batch; feature dim is full-extent.
            pl.BlockSpec((tm, d_input), lambda i: (i, 0)),
            # W and bias: same block every grid step -> stay hot in VMEM.
            pl.BlockSpec((n_pad, d_input), lambda i: (0, 0)),
            pl.BlockSpec((n_pad, 1), lambda i: (0, 0)),
        ],
        out_specs=pl.BlockSpec((n_pad, tm), lambda i: (0, i)),
        compiler_params=pltpu.CompilerParams(**cp),
        cost_estimate=cost,
    )(x_c, w_prep, b_prep)


def consequence_layer_forward(x, w_prep, b_prep, n_rules, *, block_m=1024):
    """Module-equivalent forward: returns (batch, n_rules) f32, == x @ W^T + b."""
    y_t = consequence_layer_forward_t(x, w_prep, b_prep, block_m=block_m)
    # Tiny epilogue: touches only n_rules*batch elements (no 128-lane padded slab).
    # Fused consumers should take y_t directly instead of paying this transpose.
    return y_t[:n_rules, :].T


# TODO(synk): for the tiny shapes ANFIS uses, this layer should ultimately be fused
# into a single ANFIS-forward kernel (membership + rule strengths + this linear) so
# the y^T slab never round-trips HBM; standalone it is dominated by launch cost.


if __name__ == "__main__":
    batch, d_input, n_rules = 8, 32, 8

    key = jax.random.PRNGKey(0)
    kx, kw, kb, kx2 = jax.random.split(key, 4)

    # Deterministic init mimicking PyTorch nn.Linear defaults:
    # U(-1/sqrt(d_input), 1/sqrt(d_input)) for both weight and bias.
    bound = 1.0 / jnp.sqrt(jnp.float32(d_input))
    weight = jax.random.uniform(kw, (n_rules, d_input), jnp.float32, -bound, bound)
    bias = jax.random.uniform(kb, (n_rules,), jnp.float32, -bound, bound)

    # One-time parameter preparation (sublane padding + dtype), outside the hot path.
    # (Use compute_dtype=jnp.bfloat16 on v5e/v6e/v7x if the ANFIS-level tolerance
    #  allows; the MXU accumulate and the bias/store epilogue stay f32 either way.)
    w_p, b_p = prepare_consequence_params(weight, bias, compute_dtype=jnp.float32)

    # --- Small-batch run (single full-extent block) ---
    x = jax.random.normal(kx, (batch, d_input), jnp.float32)
    y = consequence_layer_forward(x, w_p, b_p, n_rules)
    jax.block_until_ready(y)
    y_ref = x @ weight.T + bias
    assert y.shape == (batch, n_rules)
    assert jnp.allclose(y, y_ref, atol=1e-5, rtol=1e-5)

    # --- Larger, non-divisible batch: multi-step grid + ragged final block ---
    big_batch = 300
    x2 = jax.random.normal(kx2, (big_batch, d_input), jnp.float32)
    y2 = consequence_layer_forward(x2, w_p, b_p, n_rules, block_m=128)  # grid = (3,)
    jax.block_until_ready(y2)
    y2_ref = x2 @ weight.T + bias
    assert y2.shape == (big_batch, n_rules)
    assert jnp.allclose(y2, y2_ref, atol=1e-5, rtol=1e-5)

    print("KERNEL_OK")
</pallas_src>

<mosaic_0001>
module attributes {stable_mosaic.version = 11 : i64} {
  func.func @_consequence_kernel(%arg0: i32, %arg1: memref<8x32xf32, #tpu.memory_space<vmem>>, %arg2: memref<8x32xf32, #tpu.memory_space<vmem>>, %arg3: memref<8x1xf32, #tpu.memory_space<vmem>>, %arg4: memref<8x8xf32, #tpu.memory_space<vmem>>) attributes {dimension_semantics = [#tpu.dimension_semantics<parallel>], iteration_bounds = array<i64: 1>, scalar_prefetch = 0 : i64, scratch_operands = 0 : i64, tpu.core_type = #tpu.core_type<tc>, window_params = [{transform_indices = @transform_0, window_bounds = array<i64: 8, 32>}, {pipeline_mode = #tpu.pipeline_mode<synchronous>, transform_indices = @transform_1, window_bounds = array<i64: 8, 32>}, {pipeline_mode = #tpu.pipeline_mode<synchronous>, transform_indices = @transform_2, window_bounds = array<i64: 8, 1>}, {transform_indices = @transform_3, window_bounds = array<i64: 8, 8>}]} {
    %c0 = arith.constant 0 : index
    %c0_0 = arith.constant 0 : index
    %0 = vector.load %arg2[%c0, %c0_0] : memref<8x32xf32, #tpu.memory_space<vmem>>, vector<8x32xf32>
    %c0_1 = arith.constant 0 : index
    %c0_2 = arith.constant 0 : index
    %1 = vector.load %arg1[%c0_1, %c0_2] : memref<8x32xf32, #tpu.memory_space<vmem>>, vector<8x32xf32>
    %cst = arith.constant dense<0.000000e+00> : vector<8x8xf32>
    %2 = tpu.matmul %0, %1, %cst {dimension_numbers = #tpu.dot_dimension_numbers<[1], [1], [0], [0], [0, 0, 1, 0], [], []>} : vector<8x32xf32>, vector<8x32xf32>, vector<8x8xf32> -> vector<8x8xf32>
    %c0_3 = arith.constant 0 : index
    %c0_4 = arith.constant 0 : index
    %3 = vector.load %arg3[%c0_3, %c0_4] : memref<8x1xf32, #tpu.memory_space<vmem>>, vector<8x1xf32>
    %4 = vector.broadcast %3 : vector<8x1xf32> to vector<8x8xf32>
    %5 = arith.addf %2, %4 : vector<8x8xf32>
    %c0_5 = arith.constant 0 : index
    %c0_6 = arith.constant 0 : index
    %6 = vector.load %arg4[%c0_5, %c0_6] : memref<8x8xf32, #tpu.memory_space<vmem>>, vector<8x8xf32>
    tpu.vector_store %arg4[%c0_5, %c0_6], %5 {strides = array<i32>} : memref<8x8xf32, #tpu.memory_space<vmem>>, vector<8x8xf32>,
    return
  }
  func.func @transform_0(%arg0: i32) -> (i32, i32) {
    %c0_i32 = arith.constant 0 : i32
    %c0_i32_0 = arith.constant 0 : i32
    return %arg0, %c0_i32 : i32, i32
  }
  func.func @transform_1(%arg0: i32) -> (i32, i32) {
    %c0_i32 = arith.constant 0 : i32
    %c0_i32_0 = arith.constant 0 : i32
    %c0_i32_1 = arith.constant 0 : i32
    return %c0_i32, %c0_i32_0 : i32, i32
  }
  func.func @transform_2(%arg0: i32) -> (i32, i32) {
    %c0_i32 = arith.constant 0 : i32
    %c0_i32_0 = arith.constant 0 : i32
    %c0_i32_1 = arith.constant 0 : i32
    return %c0_i32, %c0_i32_0 : i32, i32
  }
  func.func @transform_3(%arg0: i32) -> (i32, i32) {
    %c0_i32 = arith.constant 0 : i32
    %c0_i32_0 = arith.constant 0 : i32
    return %c0_i32, %arg0 : i32, i32
  }
}

</mosaic_0001>

<llo_original>
// kernel: tpu_custom_call.1
$region0: #{tpu_custom_call.1}
  #allocation0 [shape = 'u32[]', space=smem, size = 0x4, offset = 0x4, fixed_abs, tag = 'smem constant byte address 0x4 - core index']
  #allocation1 [shape = 'u32[144,128]{1,0:T(1,128)}', space=vmem, size = 0x12000, scoped, tag = 'internal scratch']
  %s0 = inlined_call_operand.vmem [shape: f32[8,32], index: 0, kind: input, shape index: {}]
  %s1 = inlined_call_operand.hbm [shape: f32[8,32], index: 1, kind: input, shape index: {}]
  %s2 = inlined_call_operand.vmem [shape: f32[8,1], index: 2, kind: input, shape index: {}]
  %s3 = inlined_call_operand.hbm [shape: f32[8,8], index: 3, kind: output, shape index: {}]
  %s4 = sld [smem:[#allocation0]]
  $region26: #{tpu_custom_call.1} parent=0
    _
  %s6 = ssub.s32 1, %s4
  %s7 = scalar_select 0, %s6, %s4
  $region1: #{tpu_custom_call.1} parent=0
    #allocation2 [shape = 'u8[4096]{0}', space=vmem, size = 0x1000, scoped, tag = 'input window, operand 1, single buffered']
    #allocation3 [shape = 's32[1]{0}', space=sflag, size = 0x4, scoped, tag = 'scoped memory for tpu_custom_call.1']
    #allocation4 [shape = 's32[1]{0}', space=sflag, size = 0x4, scoped, tag = 'scoped memory for tpu_custom_call.1']
    #allocation5 [shape = 'u8[4096]{0}', space=vmem, size = 0x1000, scoped, tag = 'output window, operand 0, single buffered']
    %8 = vsyncpa [#allocation3], 0
    %9 = vsyncpa [#allocation4], 0
    // Predicated region
    $region2: #{tpu_custom_call.1} parent=1 // pred_check
      _
    $region3: #{tpu_custom_call.1} parent=1 // pred_check_branch
      %11 = sbr.rel (0) target = $region5
    $region4: #{tpu_custom_call.1} parent=1 // pred_region
      _
    $region5: #{tpu_custom_call.1} parent=1 // pred_fallthru
      _
    // Predicated region
    $region6: #{tpu_custom_call.1} parent=1 // pred_check
      _
    $region7: #{tpu_custom_call.1} parent=1 // pred_check_branch
      %13 = sbr.rel (0) target = $region9
    $region8: #{tpu_custom_call.1} parent=1 // pred_region
      %s15 = ssub.s32 128, 128
      %16 = vsyncadd [#allocation3], %s15
      %s18 = sshll.u32 [#allocation2], 4
      %s19 = int_to_ptr.vmem [resolvable:$true] %s18
      %21 = dma.hbm_to_vmem [thread:$0]  %s1, 128, %s19, [#allocation3]
    $region9: #{tpu_custom_call.1} parent=1 // pred_fallthru
      _
    // Predicated region
    $region10: #{tpu_custom_call.1} parent=1 // pred_check
      _
    $region11: #{tpu_custom_call.1} parent=1 // pred_check_branch
      %23 = sbr.rel (0) target = $region13
    $region12: #{tpu_custom_call.1} parent=1 // pred_region
      _
    $region13: #{tpu_custom_call.1} parent=1 // pred_fallthru
      _
    // Predicated region
    $region14: #{tpu_custom_call.1} parent=1 // pred_check
      _
    $region15: #{tpu_custom_call.1} parent=1 // pred_check_branch
      %25 = sbr.rel (0) target = $region17
    $region16: #{tpu_custom_call.1} parent=1 // pred_region
      %26 = dma.done [#allocation3], 128
    $region17: #{tpu_custom_call.1} parent=1 // pred_fallthru
      _
    %v27 = vld [vmem:[#allocation2] sm:$0xff]
    %v28 = vld [vmem:[%s0] sm:$0xff]
    %v29 = vld [vmem:[%s2] sm:$0xff]
    %31 = vset.pattern.permute.xlu0 0
    %32 = vperm.xlu0 %31, %v29
    %v33 = vpop.permute.xlu0 %32
    %vm35 = vcmask 261120
    %v37 = vsel %vm35, %v27, 0
    %v40 = vsel %vm35, %v28, 0
    %42 = vmatprep.subr.mxu0 0.0
    %43 = vmatpush1.xpose.msra.mxu0 0.0
    %44 = vmatprep.subr.mxu0 0.0
    %45 = vmatpush1.xpose.msra.mxu0 0.0
    %46 = vmatprep.subr.mxu0 0.0
    %47 = vmatpush1.xpose.msra.mxu0 0.0
    %48 = vmatprep.subr.mxu0 0.0
    %49 = vmatpush1.xpose.msra.mxu0 0.0
    %50 = vmatprep.subr.mxu0 0.0
    %51 = vmatpush1.xpose.msra.mxu0 0.0
    %52 = vmatprep.subr.mxu0 0.0
    %53 = vmatpush1.xpose.msra.mxu0 0.0
    %54 = vmatprep.subr.mxu0 0.0
    %55 = vmatpush1.xpose.msra.mxu0 0.0
    %56 = vmatprep.subr.mxu0 0.0
    %57 = vmatpush1.xpose.msra.mxu0 0.0
    %58 = vmatprep.subr.mxu0 0.0
    %59 = vmatpush1.xpose.msra.mxu0 0.0
    %60 = vmatprep.subr.mxu0 0.0
    %61 = vmatpush1.xpose.msra.mxu0 0.0
    %62 = vmatprep.subr.mxu0 0.0
    %63 = vmatpush1.xpose.msra.mxu0 0.0
    %64 = vmatprep.subr.mxu0 0.0
    %65 = vmatpush1.xpose.msra.mxu0 0.0
    %66 = vmatprep.subr.mxu0 0.0
    %67 = vmatpush1.xpose.msra.mxu0 0.0
    %68 = vmatprep.subr.mxu0 0.0
    %69 = vmatpush1.xpose.msra.mxu0 0.0
    %70 = vmatprep.subr.mxu0 0.0
    %71 = vmatpush1.xpose.msra.mxu0 0.0
    %72 = vmatprep.subr.mxu0 0.0
    %73 = vmatpush1.xpose.msra.mxu0 %v40
    %74 = vmatprep.subr.mxu0 0.0
    %75 = vmatpush2.xpose.msra.mxu0 0.0
    %76 = vmatprep.subr.mxu0 0.0
    %77 = vmatpush2.xpose.msra.mxu0 0.0
    %78 = vmatprep.subr.mxu0 0.0
    %79 = vmatpush2.xpose.msra.mxu0 0.0
    %80 = vmatprep.subr.mxu0 0.0
    %81 = vmatpush2.xpose.msra.mxu0 0.0
    %82 = vmatprep.subr.mxu0 0.0
    %83 = vmatpush2.xpose.msra.mxu0 0.0
    %84 = vmatprep.subr.mxu0 0.0
    %85 = vmatpush2.xpose.msra.mxu0 0.0
    %86 = vmatprep.subr.mxu0 0.0
    %87 = vmatpush2.xpose.msra.mxu0 0.0
    %88 = vmatprep.subr.mxu0 0.0
    %89 = vmatpush2.xpose.msra.mxu0 0.0
    %90 = vmatprep.subr.mxu0 0.0
    %91 = vmatpush2.xpose.msra.mxu0 0.0
    %92 = vmatprep.subr.mxu0 0.0
    %93 = vmatpush2.xpose.msra.mxu0 0.0
    %94 = vmatprep.subr.mxu0 0.0
    %95 = vmatpush2.xpose.msra.mxu0 0.0
    %96 = vmatprep.subr.mxu0 0.0
    %97 = vmatpush2.xpose.msra.mxu0 0.0
    %98 = vmatprep.subr.mxu0 0.0
    %99 = vmatpush2.xpose.msra.mxu0 0.0
    %100 = vmatprep.subr.mxu0 0.0
    %101 = vmatpush2.xpose.msra.mxu0 0.0
    %102 = vmatprep.subr.mxu0 0.0
    %103 = vmatpush2.xpose.msra.mxu0 0.0
    %104 = vmatprep.subr.mxu0 0.0
    %105 = vmatpush2.xpose.msra.mxu0 0.0
    %106 = vmatprep.mubr.f32.mxu0 0.0
    %107 = vmatmul.mubr.f32.gmra.mxu0 %v37
    %v108 = vpop.f32.mrf.mxu0
    %v109 = vadd.f32 %v33, %v108
    %v110 = vpop.f32.mrf.mxu0
    %111 = vdwg.mxu0
    %vm112 = vcmask 64512
    %113 = vst.msk [vmem:[#allocation5] sm:$0xff] %vm112, %v109
    // Predicated region
    $region18: #{tpu_custom_call.1} parent=1 // pred_check
      _
    $region19: #{tpu_custom_call.1} parent=1 // pred_check_branch
      %115 = sbr.rel (0) target = $region21
    $region20: #{tpu_custom_call.1} parent=1 // pred_region
      %s117 = ssub.s32 128, 128
      %118 = vsyncadd [#allocation4], %s117
      %s120 = sshll.u32 [#allocation5], 4
      %s121 = int_to_ptr.vmem [resolvable:$true] %s120
      %123 = dma.vmem_to_hbm [thread:$0]  %s121, 128, %s3, [#allocation4]
    $region21: #{tpu_custom_call.1} parent=1 // pred_fallthru
      _
    // Predicated region
    $region22: #{tpu_custom_call.1} parent=1 // pred_check
      _
    $region23: #{tpu_custom_call.1} parent=1 // pred_check_branch
      %125 = sbr.rel (0) target = $region25
    $region24: #{tpu_custom_call.1} parent=1 // pred_region
      %126 = dma.done [#allocation4], 128
    $region25: #{tpu_custom_call.1} parent=1 // pred_fallthru
      _
    %127 = vsyncpa [#allocation3], 1
    %128 = vsyncpa [#allocation4], 1

</llo_original>
